<compile_context>
chip_gen: v7x
topology: tpu7x:2x2x1
jax: 0.10.0
libtpu: 0.0.40
codegen_flags: <defaults>
</compile_context>

<pallas_src>
import functools

import jax
import jax.numpy as jnp
from jax.experimental import pallas as pl
from jax.experimental.pallas import tpu as pltpu


def _attention_kernel(x_ref, w_ref, out_ref, attn_ref):
    # x_ref:    (bb, T, H) block of lstm outputs (native dtype)
    # w_ref:    (1, H)     projection weight (lane-dense)
    # out_ref:  (bb, H)    weighted output
    # attn_ref: (bb, T)    attention weights
    w = w_ref[...].astype(jnp.float32)                       # (1, H)

    # attention_scores[b, t] = sum_h x[b, t, h] * w[h]
    # (VPU mul + lane reduce; upcast fuses per-vreg, f32 accumulation, no f32 tile kept)
    scores = jnp.sum(x_ref[...].astype(jnp.float32) * w, axis=-1)      # (bb, T)

    # softmax over T
    m = jnp.max(scores, axis=1, keepdims=True)               # (bb, 1)
    e = jnp.exp(scores - m)                                  # (bb, T)
    denom = jnp.sum(e, axis=1, keepdims=True)                # (bb, 1), >= 1
    inv = pl.reciprocal(denom, approx=True)                  # EUP vrcp (idle slot)
    inv = inv * (2.0 - denom * inv)                          # one Newton step -> ~f32 exact
    probs = e * inv                                          # (bb, T) f32

    # weighted_output[b, h] = sum_t probs[b, t] * x[b, t, h]
    weighted = jnp.sum(
        x_ref[...].astype(jnp.float32) * probs[:, :, None], axis=1)    # (bb, H) f32

    out_ref[...] = weighted.astype(out_ref.dtype)
    attn_ref[...] = probs.astype(attn_ref.dtype)


def _round_up(x, m):
    return (x + m - 1) // m * m


def _vmem_capacity_bytes():
    try:
        info = pltpu.get_tpu_info()
        cap = getattr(info, "vmem_capacity_bytes", None)
        if cap:
            return int(cap)
    except Exception:
        pass
    return 64 * 1024 * 1024  # conservative default (v7x per-TensorCore physical VMEM)


def _pick_bb(B, T, H, itemsize, input_target_bytes):
    """Batch rows processed per grid step."""
    if B <= 8:
        return B                                  # single exact block, no raggedness
    per_row = max(T * H * itemsize, 1)
    bb = (input_target_bytes // per_row) // 8 * 8
    bb = max(bb, 8)
    # Keep >= 2 grid steps so the "parallel" batch axis can shard across both
    # TensorCores on v7x and the pipeline has something to overlap.
    bb = min(bb, max(8, _round_up((B + 1) // 2, 8)))
    if bb >= B:
        return B
    return bb


@jax.jit
def attention_mechanism(lstm_outputs, weight):
    """
    lstm_outputs: (B, T, H)
    weight:       nn.Linear(H, 1, bias=False) weight; shape (1, H), (H, 1) or (H,)
    returns: (weighted_output (B, H), attention_weights (B, T))
    """
    B, T, H = lstm_outputs.shape
    dtype = lstm_outputs.dtype
    itemsize = jnp.dtype(dtype).itemsize

    # Generation-aware VMEM budget.
    vmem_cap = _vmem_capacity_bytes()
    vmem_limit = min(vmem_cap, max(32 * 1024 * 1024, vmem_cap // 2))
    input_target = vmem_limit // 4            # double-buffered input uses ~half the limit

    bb = _pick_bb(B, T, H, itemsize, input_target)
    grid = pl.cdiv(B, bb)

    # Per-step VMEM estimate: 2x input buffers + 2x output buffers + f32 temps + slack.
    est = (2 * bb * T * H * itemsize
           + 2 * bb * (T + H) * itemsize
           + bb * (2 * T + H + 8) * 4
           + (4 << 20))
    if est > vmem_limit:
        # A single bb-row block exceeds the target budget (very large T*H): raise the
        # scoped limit toward physical rather than failing to compile.
        vmem_limit = min(vmem_cap, int(est))

    w_row = jnp.reshape(weight, (1, H)).astype(dtype)

    cost = pl.CostEstimate(
        flops=4 * B * T * H,
        transcendentals=B * T,
        bytes_accessed=B * T * H * itemsize + B * (T + H) * itemsize + H * itemsize,
    )

    weighted, attn = pl.pallas_call(
        _attention_kernel,
        out_shape=(
            jax.ShapeDtypeStruct((B, H), dtype),
            jax.ShapeDtypeStruct((B, T), dtype),
        ),
        grid_spec=pltpu.PrefetchScalarGridSpec(
            num_scalar_prefetch=0,
            grid=(grid,),
            in_specs=[
                pl.BlockSpec((bb, T, H), lambda b: (b, 0, 0)),
                pl.BlockSpec((1, H), lambda b: (0, 0)),
            ],
            out_specs=[
                pl.BlockSpec((bb, H), lambda b: (b, 0)),
                pl.BlockSpec((bb, T), lambda b: (b, 0)),
            ],
        ),
        compiler_params=pltpu.CompilerParams(
            dimension_semantics=("parallel",),
            vmem_limit_bytes=int(vmem_limit),
        ),
        cost_estimate=cost,
    )(lstm_outputs, w_row)

    return weighted, attn


def _reference(lstm_outputs, weight):
    w = jnp.reshape(weight, (-1,))
    scores = jnp.einsum("bth,h->bt", lstm_outputs, w)
    attn = jax.nn.softmax(scores, axis=1)
    weighted = jnp.sum(lstm_outputs * attn[..., None], axis=1)
    return weighted, attn


if __name__ == "__main__":
    B, T, H = 2, 8, 32
    key = jax.random.PRNGKey(0)
    kx, kw = jax.random.split(key)

    lstm_outputs = jax.random.normal(kx, (B, T, H), dtype=jnp.float32)
    # nn.Linear(hidden_dim, 1, bias=False): weight shape (1, H)
    bound = 1.0 / (H ** 0.5)
    weight = jax.random.uniform(kw, (1, H), minval=-bound, maxval=bound,
                                dtype=jnp.float32)

    weighted_out, attn_weights = attention_mechanism(lstm_outputs, weight)
    weighted_out = jax.block_until_ready(weighted_out)
    attn_weights = jax.block_until_ready(attn_weights)

    ref_out, ref_attn = _reference(lstm_outputs, weight)
    assert jnp.allclose(weighted_out, ref_out, atol=1e-5, rtol=1e-5)
    assert jnp.allclose(attn_weights, ref_attn, atol=1e-5, rtol=1e-5)

    print("KERNEL_OK")
</pallas_src>

<mosaic_0001>
module attributes {stable_mosaic.version = 11 : i64} {
  func.func @_attention_kernel(%arg0: i32, %arg1: memref<2x8x32xf32, #tpu.memory_space<vmem>>, %arg2: memref<1x32xf32, #tpu.memory_space<vmem>>, %arg3: memref<2x32xf32, #tpu.memory_space<vmem>>, %arg4: memref<2x8xf32, #tpu.memory_space<vmem>>) attributes {dimension_semantics = [#tpu.dimension_semantics<parallel>], iteration_bounds = array<i64: 1>, scalar_prefetch = 0 : i64, scratch_operands = 0 : i64, tpu.core_type = #tpu.core_type<tc>, window_params = [{transform_indices = @transform_0, window_bounds = array<i64: 2, 8, 32>}, {pipeline_mode = #tpu.pipeline_mode<synchronous>, transform_indices = @transform_1, window_bounds = array<i64: 1, 32>}, {transform_indices = @transform_2, window_bounds = array<i64: 2, 32>}, {transform_indices = @transform_3, window_bounds = array<i64: 2, 8>}]} {
    %c0 = arith.constant 0 : index
    %c0_0 = arith.constant 0 : index
    %0 = vector.load %arg2[%c0, %c0_0] : memref<1x32xf32, #tpu.memory_space<vmem>>, vector<1x32xf32>
    %c0_1 = arith.constant 0 : index
    %c0_2 = arith.constant 0 : index
    %c0_3 = arith.constant 0 : index
    %1 = vector.load %arg1[%c0_1, %c0_2, %c0_3] : memref<2x8x32xf32, #tpu.memory_space<vmem>>, vector<2x8x32xf32>
    %2 = vector.shape_cast %0 : vector<1x32xf32> to vector<1x1x32xf32>
    %3 = vector.broadcast %2 : vector<1x1x32xf32> to vector<2x8x32xf32>
    %4 = arith.mulf %1, %3 : vector<2x8x32xf32>
    %cst = arith.constant dense<0.000000e+00> : vector<2x8xf32>
    %5 = vector.multi_reduction <add>, %4, %cst [2] : vector<2x8x32xf32> to vector<2x8xf32>
    %cst_4 = arith.constant dense<0xFF800000> : vector<2xf32>
    %6 = vector.multi_reduction <maximumf>, %5, %cst_4 [1] : vector<2x8xf32> to vector<2xf32>
    %7 = vector.shape_cast %6 : vector<2xf32> to vector<2x1xf32>
    %8 = vector.broadcast %7 : vector<2x1xf32> to vector<2x8xf32>
    %9 = arith.subf %5, %8 : vector<2x8xf32>
    %10 = math.exp %9 : vector<2x8xf32>
    %cst_5 = arith.constant dense<0.000000e+00> : vector<2xf32>
    %11 = vector.multi_reduction <add>, %10, %cst_5 [1] : vector<2x8xf32> to vector<2xf32>
    %12 = vector.shape_cast %11 : vector<2xf32> to vector<2x1xf32>
    %13 = tpu.reciprocal %12 {approx = true} : vector<2x1xf32> -> vector<2x1xf32>
    %14 = arith.mulf %12, %13 : vector<2x1xf32>
    %cst_6 = arith.constant 2.000000e+00 : f32
    %15 = vector.broadcast %cst_6 : f32 to vector<2x1xf32>
    %16 = arith.subf %15, %14 : vector<2x1xf32>
    %17 = arith.mulf %13, %16 : vector<2x1xf32>
    %18 = vector.broadcast %17 : vector<2x1xf32> to vector<2x8xf32>
    %19 = arith.mulf %10, %18 : vector<2x8xf32>
    %c0_7 = arith.constant 0 : index
    %c0_8 = arith.constant 0 : index
    %c0_9 = arith.constant 0 : index
    %20 = vector.load %arg1[%c0_7, %c0_8, %c0_9] : memref<2x8x32xf32, #tpu.memory_space<vmem>>, vector<2x8x32xf32>
    %21 = vector.shape_cast %19 : vector<2x8xf32> to vector<2x8x1xf32>
    %22 = vector.broadcast %21 : vector<2x8x1xf32> to vector<2x8x32xf32>
    %23 = arith.mulf %20, %22 : vector<2x8x32xf32>
    %cst_10 = arith.constant dense<0.000000e+00> : vector<2x32xf32>
    %24 = vector.multi_reduction <add>, %23, %cst_10 [1] : vector<2x8x32xf32> to vector<2x32xf32>
    %c0_11 = arith.constant 0 : index
    %c0_12 = arith.constant 0 : index
    %25 = vector.load %arg3[%c0_11, %c0_12] : memref<2x32xf32, #tpu.memory_space<vmem>>, vector<2x32xf32>
    tpu.vector_store %arg3[%c0_11, %c0_12], %24 {strides = array<i32>} : memref<2x32xf32, #tpu.memory_space<vmem>>, vector<2x32xf32>,
    %c0_13 = arith.constant 0 : index
    %c0_14 = arith.constant 0 : index
    %26 = vector.load %arg4[%c0_13, %c0_14] : memref<2x8xf32, #tpu.memory_space<vmem>>, vector<2x8xf32>
    tpu.vector_store %arg4[%c0_13, %c0_14], %19 {strides = array<i32>} : memref<2x8xf32, #tpu.memory_space<vmem>>, vector<2x8xf32>,
    return
  }
  func.func @transform_0(%arg0: i32) -> (i32, i32, i32) {
    %c0_i32 = arith.constant 0 : i32
    %c0_i32_0 = arith.constant 0 : i32
    %c0_i32_1 = arith.constant 0 : i32
    return %arg0, %c0_i32, %c0_i32_0 : i32, i32, i32
  }
  func.func @transform_1(%arg0: i32) -> (i32, i32) {
    %c0_i32 = arith.constant 0 : i32
    %c0_i32_0 = arith.constant 0 : i32
    %c0_i32_1 = arith.constant 0 : i32
    return %c0_i32, %c0_i32_0 : i32, i32
  }
  func.func @transform_2(%arg0: i32) -> (i32, i32) {
    %c0_i32 = arith.constant 0 : i32
    %c0_i32_0 = arith.constant 0 : i32
    return %arg0, %c0_i32 : i32, i32
  }
  func.func @transform_3(%arg0: i32) -> (i32, i32) {
    %c0_i32 = arith.constant 0 : i32
    %c0_i32_0 = arith.constant 0 : i32
    return %arg0, %c0_i32 : i32, i32
  }
}

</mosaic_0001>

<llo_original>
// kernel: attention_mechanism.1
$region0: #{attention_mechanism.1}
  #allocation0 [shape = 'u32[]', space=smem, size = 0x4, offset = 0x4, fixed_abs, tag = 'smem constant byte address 0x4 - core index']
  #allocation1 [shape = 'u32[144,128]{1,0:T(1,128)}', space=vmem, size = 0x12000, scoped, tag = 'internal scratch']
  %s0 = inlined_call_operand.hbm [shape: f32[2,8,32], index: 0, kind: input, shape index: {}]
  %s1 = inlined_call_operand.vmem [shape: f32[1,32], index: 1, kind: input, shape index: {}]
  %s2 = inlined_call_operand.hbm [shape: f32[2,32], index: 2, kind: output, shape index: {0}]
  %s3 = inlined_call_operand.hbm [shape: f32[2,8], index: 3, kind: output, shape index: {1}]
  %4 = xla_tuple %s2, %s3
  %s5 = sld [smem:[#allocation0]]
  $region30: #{attention_mechanism.1} parent=0
    _
  %s7 = ssub.s32 1, %s5
  %s8 = scalar_select 0, %s7, %s5
  $region1: #{attention_mechanism.1} parent=0
    #allocation2 [shape = 'u8[8192]{0}', space=vmem, size = 0x2000, scoped, tag = 'input window, operand 0, single buffered']
    #allocation3 [shape = 's32[1]{0}', space=sflag, size = 0x4, scoped, tag = 'scoped memory for attention_mechanism.1']
    #allocation4 [shape = 's32[1]{0}', space=sflag, size = 0x4, scoped, tag = 'scoped memory for attention_mechanism.1']
    #allocation5 [shape = 'u8[1024]{0}', space=vmem, size = 0x400, scoped, tag = 'output window, operand 0, single buffered']
    #allocation6 [shape = 'u8[1024]{0}', space=vmem, size = 0x400, scoped, tag = 'output window, operand 1, single buffered']
    #allocation7 [shape = 's32[1]{0}', space=sflag, size = 0x4, scoped, tag = 'scoped memory for attention_mechanism.1']
    %9 = vsyncpa [#allocation3], 0
    %10 = vsyncpa [#allocation4], 0
    %11 = vsyncpa [#allocation7], 0
    // Predicated region
    $region2: #{attention_mechanism.1} parent=1 // pred_check
      _
    $region3: #{attention_mechanism.1} parent=1 // pred_check_branch
      %13 = sbr.rel (0) target = $region5
    $region4: #{attention_mechanism.1} parent=1 // pred_region
      %s15 = ssub.s32 256, 256
      %16 = vsyncadd [#allocation3], %s15
      %s17 = sshll.u32 [#allocation2], 4
      %s18 = int_to_ptr.vmem [resolvable:$true] %s17
      %23 = dma.hbm_to_vmem [thread:$0]  %s0, 256, %s18, [#allocation3], 128, 128, 8
    $region5: #{attention_mechanism.1} parent=1 // pred_fallthru
      _
    // Predicated region
    $region6: #{attention_mechanism.1} parent=1 // pred_check
      _
    $region7: #{attention_mechanism.1} parent=1 // pred_check_branch
      %25 = sbr.rel (0) target = $region9
    $region8: #{attention_mechanism.1} parent=1 // pred_region
      _
    $region9: #{attention_mechanism.1} parent=1 // pred_fallthru
      _
    // Predicated region
    $region10: #{attention_mechanism.1} parent=1 // pred_check
      _
    $region11: #{attention_mechanism.1} parent=1 // pred_check_branch
      %27 = sbr.rel (0) target = $region13
    $region12: #{attention_mechanism.1} parent=1 // pred_region
      %28 = dma.done [#allocation3], 256
    $region13: #{attention_mechanism.1} parent=1 // pred_fallthru
      _
    %v29 = vld [vmem:[%s1] sm:$0x1]
    %v30 = vld [vmem:[#allocation2] sm:$0xff]
    %v31 = vld [vmem:[#allocation2 + $0x8] sm:$0xff]
    %v33 = vlaneseq
    %v34 = vshrl.u32 %v33, 7
    %v35 = vsub.s32 0, %v34
    %v36 = vrot.slane %v29, %v35
    %v38 = vmul.f32 %v30, %v36
    %v39 = vmul.f32 %v31, %v36
    %vm40 = vcmask 261120
    %v41 = vsel %vm40, %v38, 0.0
    %42 = vadd.xlane.f32.xlu0 %v41
    %v43 = vpop.xlane.xlu0 %42
    %v44 = vsel %vm40, %v39, 0.0
    %45 = vadd.xlane.f32.xlu0 %v44
    %v46 = vpop.xlane.xlu0 %45
    %v49 = vlaneseq
    %v50 = vand.u32 %v49, 127
    %v51 = vlaneseq
    %v52 = vshrl.u32 %v51, 7
    %v53 = vsub.s32 %v50, %v52
    %v54 = vrot.slane %v43, %v53
    %v55 = vlaneseq
    %v56 = vshrl.u32 %v55, 7
    %v57 = vsub.s32 %v50, %v56
    %v58 = vrot.slane %v46, %v57
    %vm59 = vcmask 1041409
    %v60 = vsel %vm59, %v58, %v54
    %vm62 = vcmask 58368
    %v63 = vsel %vm62, %v60, -inf
    %64 = vmax.xlane.f32.xlu0 %v63
    %v65 = vpop.xlane.xlu0 %64
    %v67 = vlaneseq
    %v68 = vshrl.u32 %v67, 7
    %v69 = vsub.s32 0, %v68
    %v70 = vrot.slane %v65, %v69
    %v71 = vlaneseq
    %v72 = vshrl.u32 %v71, 7
    %v73 = vsub.s32 1, %v72
    %v74 = vrot.slane %v65, %v73
    %v77 = vsub.f32 %v43, %v70
    %v78 = vsub.f32 %v46, %v74
    %v79 = vmul.f32 %v77, 1.442695
    %v80 = vpow.pop %v79
    %v81 = vmul.f32 %v78, 1.442695
    %v82 = vpow.pop %v81
    %85 = vset.pattern.permute.xlu0 0
    %86 = vperm.xlu0 %85, %v80
    %v87 = vpop.permute.xlu0 %86
    %88 = vset.pattern.permute.xlu0 0
    %89 = vperm.xlu0 %88, %v82
    %v90 = vpop.permute.xlu0 %89
    %v91 = vlaneseq
    %v92 = vshrl.u32 %v91, 7
    %v93 = vsub.s32 %v50, %v92
    %v94 = vrot.slane %v87, %v93
    %v95 = vlaneseq
    %v96 = vshrl.u32 %v95, 7
    %v97 = vsub.s32 %v50, %v96
    %v98 = vrot.slane %v90, %v97
    %v99 = vsel %vm59, %v98, %v94
    %v101 = vsel %vm62, %v99, 0.0
    %102 = vadd.xlane.f32.xlu0 %v101
    %v103 = vpop.xlane.xlu0 %102
    %v104 = vrcp.pop %v103
    %v105 = vmul.f32 %v103, %v104
    %v106 = vsub.f32 2.0, %v105
    %v107 = vmul.f32 %v104, %v106
    %v109 = vlaneseq
    %v110 = vshrl.u32 %v109, 7
    %v111 = vsub.s32 0, %v110
    %v112 = vrot.slane %v107, %v111
    %v113 = vlaneseq
    %v114 = vshrl.u32 %v113, 7
    %v115 = vsub.s32 1, %v114
    %v116 = vrot.slane %v107, %v115
    %v119 = vmul.f32 %v80, %v112
    %v120 = vmul.f32 %v82, %v116
    %122 = vset.pattern.permute.xlu0 0
    %123 = vperm.xlu0 %122, %v119
    %v124 = vpop.permute.xlu0 %123
    %127 = vset.pattern.permute.xlu0 0
    %128 = vperm.xlu0 %127, %v120
    %v129 = vpop.permute.xlu0 %128
    %v131 = vmul.f32 %v30, %v124
    %v132 = vmul.f32 %v31, %v129
    %v133 = vsel %vm40, %v131, 0.0
    %v134 = vrot.slane %v133, 4
    %v135 = vadd.f32 %v133, %v134
    %v136 = vrot.slane %v135, 2
    %v137 = vadd.f32 %v135, %v136
    %v138 = vrot.slane %v137, 1
    %v139 = vadd.f32 %v137, %v138
    %v140 = vsel %vm40, %v132, 0.0
    %v141 = vrot.slane %v140, 4
    %v142 = vadd.f32 %v140, %v141
    %v143 = vrot.slane %v142, 2
    %v144 = vadd.f32 %v142, %v143
    %v145 = vrot.slane %v144, 1
    %v146 = vadd.f32 %v144, %v145
    %v149 = vsel %vm59, %v146, %v139
    %vm151 = vcmask 254976
    %152 = vst.msk [vmem:[#allocation5] sm:$0x3] %vm151, %v149
    %v153 = vlaneseq
    %v154 = vshrl.u32 %v153, 7
    %v155 = vsub.s32 %v50, %v154
    %v156 = vrot.slane %v124, %v155
    %v157 = vlaneseq
    %v158 = vshrl.u32 %v157, 7
    %v159 = vsub.s32 %v50, %v158
    %v160 = vrot.slane %v129, %v159
    %v161 = vsel %vm59, %v160, %v156
    %163 = vst.msk [vmem:[#allocation6] sm:$0x3] %vm62, %v161
    // Predicated region
    $region14: #{attention_mechanism.1} parent=1 // pred_check
      _
    $region15: #{attention_mechanism.1} parent=1 // pred_check_branch
      %165 = sbr.rel (0) target = $region17
    $region16: #{attention_mechanism.1} parent=1 // pred_region
      %s167 = ssub.s32 32, 32
      %168 = vsyncadd [#allocation4], %s167
      %s170 = sshll.u32 [#allocation5], 4
      %s171 = int_to_ptr.vmem [resolvable:$true] %s170
      %173 = dma.vmem_to_hbm [thread:$0]  %s171, 32, %s2, [#allocation4]
    $region17: #{attention_mechanism.1} parent=1 // pred_fallthru
      _
    // Predicated region
    $region18: #{attention_mechanism.1} parent=1 // pred_check
      _
    $region19: #{attention_mechanism.1} parent=1 // pred_check_branch
      %175 = sbr.rel (0) target = $region21
    $region20: #{attention_mechanism.1} parent=1 // pred_region
      %s177 = ssub.s32 32, 32
      %178 = vsyncadd [#allocation7], %s177
      %s180 = sshll.u32 [#allocation6], 4
      %s181 = int_to_ptr.vmem [resolvable:$true] %s180
      %183 = dma.vmem_to_hbm [thread:$0]  %s181, 32, %s3, [#allocation7]
    $region21: #{attention_mechanism.1} parent=1 // pred_fallthru
      _
    // Predicated region
    $region22: #{attention_mechanism.1} parent=1 // pred_check
      _
    $region23: #{attention_mechanism.1} parent=1 // pred_check_branch
      %185 = sbr.rel (0) target = $region25
    $region24: #{attention_mechanism.1} parent=1 // pred_region
      %186 = dma.done [#allocation4], 32
    $region25: #{attention_mechanism.1} parent=1 // pred_fallthru
      _
    // Predicated region
    $region26: #{attention_mechanism.1} parent=1 // pred_check
      _
    $region27: #{attention_mechanism.1} parent=1 // pred_check_branch
      %188 = sbr.rel (0) target = $region29
    $region28: #{attention_mechanism.1} parent=1 // pred_region
      %189 = dma.done [#allocation7], 32
    $region29: #{attention_mechanism.1} parent=1 // pred_fallthru
      _
    %190 = vsyncpa [#allocation3], 1
    %191 = vsyncpa [#allocation4], 1
    %192 = vsyncpa [#allocation7], 1

</llo_original>
